<compile_context>
chip_gen: v5e
topology: v5e:2x2
jax: 0.10.0
libtpu: 0.0.40
codegen_flags: <defaults>
</compile_context>

<pallas_src>
import functools

import jax
import jax.numpy as jnp
from jax.experimental import pallas as pl
from jax.experimental.pallas import tpu as pltpu

_LANE = 128
_ROW_QUANTUM = 16  # multiple of both the f32 (8) and bf16 (16) sublane quanta


def _round_up(x, m):
    return ((x + m - 1) // m) * m


def _fused_mlp_kernel(*refs, num_layers, compute_dtype):
    """Whole MLP for one row tile.

    refs = (x_ref, w_0..w_{L-1}, b_0..b_{L-1}, o_ref)
      x_ref : (TILE_M, Pin_0)   activation tile, original dtype (cast in-kernel)
      w_i   : (Pin_i, Pout_i)   zero-padded weights, compute_dtype, VMEM-resident
      b_i   : (1, Pout_i)       zero-padded biases, f32, VMEM-resident
      o_ref : (TILE_M, Pout_{L-1})  f32
    """
    x_ref = refs[0]
    w_refs = refs[1:1 + num_layers]
    b_refs = refs[1 + num_layers:1 + 2 * num_layers]
    o_ref = refs[1 + 2 * num_layers]

    h = x_ref[...].astype(compute_dtype)     # cast folded into kernel
    for i in range(num_layers):              # static unroll: L is small, trace-time known
        acc = jnp.dot(h, w_refs[i][...], preferred_element_type=jnp.float32)
        acc = acc + b_refs[i][...]           # f32 bias add (broadcast over rows)
        if i < num_layers - 1:
            h = jnp.maximum(acc, 0.0).astype(compute_dtype)   # f32 ReLU -> MXU dtype
        else:
            h = acc
    o_ref[...] = h.astype(o_ref.dtype)


def pack_mlp_params(params, compute_dtype=jnp.bfloat16):
    """One-time packing (call at init, NOT per forward).

    params: list of (w:(in,out), b:(out,)).  Returns (packed_w, packed_b, out_dim)
    with each layer zero-padded to lane-dense multiples of 128.
    """
    packed_w, packed_b = [], []
    for (w, b) in params:
        n_in, n_out = w.shape
        pi, po = _round_up(n_in, _LANE), _round_up(n_out, _LANE)
        packed_w.append(jnp.pad(w.astype(compute_dtype),
                                ((0, pi - n_in), (0, po - n_out))))
        packed_b.append(jnp.pad(b.astype(jnp.float32), (0, po - n_out)).reshape(1, po))
    out_dim = params[-1][0].shape[1]
    return packed_w, packed_b, out_dim


def mlp_pallas_apply(x, packed_w, packed_b, *, out_dim, tile_m=512, interpret=False):
    """Fused MLP forward: ReLU on every layer except the last.

    x: (..., input_dim);  packed_w/packed_b from pack_mlp_params  ->  (..., out_dim) f32
    """
    num_layers = len(packed_w)
    compute_dtype = packed_w[0].dtype
    lead_shape = x.shape[:-1]
    k0 = x.shape[-1]
    xf = x.reshape(-1, k0)
    M = xf.shape[0]

    p_in0 = packed_w[0].shape[0]
    p_out = packed_w[-1].shape[1]
    assert p_in0 == _round_up(k0, _LANE), "packed params do not match input_dim"

    # ---------------- VMEM budgeting & row tiling ----------------
    x_bytes = jnp.dtype(x.dtype).itemsize
    c_bytes = jnp.dtype(compute_dtype).itemsize
    w_resident = (sum(w.size for w in packed_w) * c_bytes
                  + sum(b.size for b in packed_b) * 4)      # single copy (not pipelined)
    p_max = max(w.shape[1] for w in packed_w)

    def vmem_estimate(tm):
        x_blk = 2 * tm * p_in0 * x_bytes        # double-buffered input tiles
        o_blk = 2 * tm * p_out * 4              # double-buffered output tiles
        tmp = 3 * tm * p_max * 4                # h/acc temporaries (compiler-managed VMEM)
        return w_resident + x_blk + o_blk + tmp

    TILE_M = min(tile_m, _round_up(M, _ROW_QUANTUM))
    TILE_M = max(_round_up(TILE_M, _ROW_QUANTUM), _ROW_QUANTUM)
    # Split M into >=2 tiles whenever there are enough rows so v7x's two TCs both work.
    m_rounded = _round_up(M, _ROW_QUANTUM)
    if m_rounded >= 2 * _ROW_QUANTUM:
        TILE_M = min(TILE_M, _round_up((m_rounded + 1) // 2, _ROW_QUANTUM))
    # Cap the tile so everything fits a conservative cross-generation VMEM budget.
    VMEM_BUDGET = 40 * 1024 * 1024
    while vmem_estimate(TILE_M) > VMEM_BUDGET and TILE_M > _ROW_QUANTUM:
        TILE_M = max(_round_up(TILE_M // 2, _ROW_QUANTUM), _ROW_QUANTUM)
    # TODO(synk): if the resident weights alone exceed ~half of VMEM, fall back to a
    # layer-gridded / K,N-tiled variant instead of the all-weights-resident fast path.

    M_pad = _round_up(M, TILE_M)

    # Skip the pad round-trip entirely when shapes are already aligned.
    if M_pad == M and p_in0 == k0:
        x_in = xf
    else:
        x_in = jnp.pad(xf, ((0, M_pad - M), (0, p_in0 - k0)))

    vmem_limit = int(min(64 * 1024 * 1024,
                         max(32 * 1024 * 1024, 2 * vmem_estimate(TILE_M))))

    kernel = functools.partial(_fused_mlp_kernel,
                               num_layers=num_layers, compute_dtype=compute_dtype)
    resident = pl.BlockSpec(memory_space=pltpu.MemorySpace.VMEM)  # whole array, one copy

    out_pad = pl.pallas_call(
        kernel,
        out_shape=jax.ShapeDtypeStruct((M_pad, p_out), jnp.float32),
        grid_spec=pltpu.PrefetchScalarGridSpec(
            num_scalar_prefetch=0,
            grid=(M_pad // TILE_M,),
            in_specs=[pl.BlockSpec((TILE_M, p_in0), lambda i: (i, 0))]  # M-tiled activations
                     + [resident] * (2 * num_layers),                   # weights then biases
            out_specs=pl.BlockSpec((TILE_M, p_out), lambda i: (i, 0)),
        ),
        compiler_params=pltpu.CompilerParams(
            dimension_semantics=("parallel",),      # shard M tiles across v7x's 2 TCs
            vmem_limit_bytes=vmem_limit,
        ),
        interpret=interpret,
    )(x_in, *packed_w, *packed_b)

    return out_pad[:M, :out_dim].reshape(*lead_shape, out_dim)


def mlp_pallas(x, params, *, compute_dtype=jnp.bfloat16, tile_m=512):
    """Convenience one-shot wrapper (packs per call; prefer pack once + apply)."""
    pw, pb, out_dim = pack_mlp_params(params, compute_dtype=compute_dtype)
    return mlp_pallas_apply(x, pw, pb, out_dim=out_dim, tile_m=tile_m)


def init_mlp_params(key, input_dim, hidden_dim, output_dim, num_layers,
                    dtype=jnp.float32):
    """Deterministic init matching nn.Linear shapes (w stored as (in, out))."""
    h = [hidden_dim] * (num_layers - 1)
    in_dims = [input_dim] + h
    out_dims = h + [output_dim]
    params = []
    for n_in, n_out in zip(in_dims, out_dims):
        key, kw, kb = jax.random.split(key, 3)
        bound = 1.0 / jnp.sqrt(jnp.asarray(n_in, dtype))
        w = jax.random.uniform(kw, (n_in, n_out), dtype, -bound, bound)
        b = jax.random.uniform(kb, (n_out,), dtype, -bound, bound)
        params.append((w, b))
    return params


def _reference_mlp(x, params):
    lead_shape = x.shape[:-1]
    h = x.reshape(-1, x.shape[-1])
    for i, (w, b) in enumerate(params):
        h = h @ w + b
        if i < len(params) - 1:
            h = jnp.maximum(h, 0.0)
    return h.reshape(*lead_shape, h.shape[-1])


if __name__ == "__main__":
    # Small shapes consistent with the module: (batch, seq, input_dim)
    batch, seq = 2, 8
    input_dim, hidden_dim, output_dim, num_layers = 32, 32, 16, 3

    key = jax.random.PRNGKey(0)
    kx, kp = jax.random.split(key)
    x = jax.random.normal(kx, (batch, seq, input_dim), jnp.float32)
    params = init_mlp_params(kp, input_dim, hidden_dim, output_dim, num_layers)

    ref = _reference_mlp(x, params)

    fwd = jax.jit(mlp_pallas_apply, static_argnames=("out_dim", "tile_m", "interpret"))

    # f32-operand path (exact numerics check).
    pw32, pb32, od = pack_mlp_params(params, compute_dtype=jnp.float32)  # pack once
    out_f32 = jax.block_until_ready(fwd(x, pw32, pb32, out_dim=od))
    assert out_f32.shape == (batch, seq, output_dim)
    assert jnp.allclose(out_f32, ref, atol=2e-5, rtol=2e-5)

    # bf16 MXU-operand path (default): f32 accumulate + f32 bias/ReLU epilogue.
    pwbf, pbbf, od = pack_mlp_params(params)                             # pack once
    out_bf16 = jax.block_until_ready(fwd(x, pwbf, pbbf, out_dim=od))
    assert out_bf16.shape == (batch, seq, output_dim)
    assert jnp.allclose(out_bf16, ref, atol=5e-2, rtol=5e-2)

    print("KERNEL_OK")
</pallas_src>

<mosaic_0001>
module attributes {stable_mosaic.version = 11 : i64} {
  func.func @_fused_mlp_kernel(%arg0: i32, %arg1: memref<16x128xf32, #tpu.memory_space<vmem>>, %arg2: memref<128x128xf32, #tpu.memory_space<vmem>>, %arg3: memref<128x128xf32, #tpu.memory_space<vmem>>, %arg4: memref<128x128xf32, #tpu.memory_space<vmem>>, %arg5: memref<1x128xf32, #tpu.memory_space<vmem>>, %arg6: memref<1x128xf32, #tpu.memory_space<vmem>>, %arg7: memref<1x128xf32, #tpu.memory_space<vmem>>, %arg8: memref<16x128xf32, #tpu.memory_space<vmem>>) attributes {dimension_semantics = [#tpu.dimension_semantics<parallel>], iteration_bounds = array<i64: 1>, scalar_prefetch = 0 : i64, scratch_operands = 0 : i64, tpu.core_type = #tpu.core_type<tc>, window_params = [{transform_indices = @transform_0, window_bounds = array<i64: 16, 128>}, {pipeline_mode = #tpu.pipeline_mode<synchronous>, transform_indices = @transform_1, window_bounds = array<i64: 128, 128>}, {pipeline_mode = #tpu.pipeline_mode<synchronous>, transform_indices = @transform_2, window_bounds = array<i64: 128, 128>}, {pipeline_mode = #tpu.pipeline_mode<synchronous>, transform_indices = @transform_3, window_bounds = array<i64: 128, 128>}, {pipeline_mode = #tpu.pipeline_mode<synchronous>, transform_indices = @transform_4, window_bounds = array<i64: 1, 128>}, {pipeline_mode = #tpu.pipeline_mode<synchronous>, transform_indices = @transform_5, window_bounds = array<i64: 1, 128>}, {pipeline_mode = #tpu.pipeline_mode<synchronous>, transform_indices = @transform_6, window_bounds = array<i64: 1, 128>}, {transform_indices = @transform_7, window_bounds = array<i64: 16, 128>}]} {
    %c0 = arith.constant 0 : index
    %c0_0 = arith.constant 0 : index
    %0 = vector.load %arg1[%c0, %c0_0] : memref<16x128xf32, #tpu.memory_space<vmem>>, vector<16x128xf32>
    %c0_1 = arith.constant 0 : index
    %c0_2 = arith.constant 0 : index
    %1 = vector.load %arg2[%c0_1, %c0_2] : memref<128x128xf32, #tpu.memory_space<vmem>>, vector<128x128xf32>
    %cst = arith.constant dense<0.000000e+00> : vector<16x128xf32>
    %2 = tpu.matmul %0, %1, %cst {dimension_numbers = #tpu.dot_dimension_numbers<[1], [0], [0], [1], [0, 0, 1, 1], [], []>} : vector<16x128xf32>, vector<128x128xf32>, vector<16x128xf32> -> vector<16x128xf32>
    %c0_3 = arith.constant 0 : index
    %c0_4 = arith.constant 0 : index
    %3 = vector.load %arg5[%c0_3, %c0_4] : memref<1x128xf32, #tpu.memory_space<vmem>>, vector<1x128xf32>
    %4 = vector.broadcast %3 : vector<1x128xf32> to vector<16x128xf32>
    %5 = arith.addf %2, %4 : vector<16x128xf32>
    %cst_5 = arith.constant 0.000000e+00 : f32
    %6 = vector.broadcast %cst_5 : f32 to vector<16x128xf32>
    %7 = arith.maximumf %5, %6 : vector<16x128xf32>
    %c0_6 = arith.constant 0 : index
    %c0_7 = arith.constant 0 : index
    %8 = vector.load %arg3[%c0_6, %c0_7] : memref<128x128xf32, #tpu.memory_space<vmem>>, vector<128x128xf32>
    %cst_8 = arith.constant dense<0.000000e+00> : vector<16x128xf32>
    %9 = tpu.matmul %7, %8, %cst_8 {dimension_numbers = #tpu.dot_dimension_numbers<[1], [0], [0], [1], [0, 0, 1, 1], [], []>} : vector<16x128xf32>, vector<128x128xf32>, vector<16x128xf32> -> vector<16x128xf32>
    %c0_9 = arith.constant 0 : index
    %c0_10 = arith.constant 0 : index
    %10 = vector.load %arg6[%c0_9, %c0_10] : memref<1x128xf32, #tpu.memory_space<vmem>>, vector<1x128xf32>
    %11 = vector.broadcast %10 : vector<1x128xf32> to vector<16x128xf32>
    %12 = arith.addf %9, %11 : vector<16x128xf32>
    %cst_11 = arith.constant 0.000000e+00 : f32
    %13 = vector.broadcast %cst_11 : f32 to vector<16x128xf32>
    %14 = arith.maximumf %12, %13 : vector<16x128xf32>
    %c0_12 = arith.constant 0 : index
    %c0_13 = arith.constant 0 : index
    %15 = vector.load %arg4[%c0_12, %c0_13] : memref<128x128xf32, #tpu.memory_space<vmem>>, vector<128x128xf32>
    %cst_14 = arith.constant dense<0.000000e+00> : vector<16x128xf32>
    %16 = tpu.matmul %14, %15, %cst_14 {dimension_numbers = #tpu.dot_dimension_numbers<[1], [0], [0], [1], [0, 0, 1, 1], [], []>} : vector<16x128xf32>, vector<128x128xf32>, vector<16x128xf32> -> vector<16x128xf32>
    %c0_15 = arith.constant 0 : index
    %c0_16 = arith.constant 0 : index
    %17 = vector.load %arg7[%c0_15, %c0_16] : memref<1x128xf32, #tpu.memory_space<vmem>>, vector<1x128xf32>
    %18 = vector.broadcast %17 : vector<1x128xf32> to vector<16x128xf32>
    %19 = arith.addf %16, %18 : vector<16x128xf32>
    %c0_17 = arith.constant 0 : index
    %c0_18 = arith.constant 0 : index
    %20 = vector.load %arg8[%c0_17, %c0_18] : memref<16x128xf32, #tpu.memory_space<vmem>>, vector<16x128xf32>
    tpu.vector_store %arg8[%c0_17, %c0_18], %19 {strides = array<i32>} : memref<16x128xf32, #tpu.memory_space<vmem>>, vector<16x128xf32>,
    return
  }
  func.func @transform_0(%arg0: i32) -> (i32, i32) {
    %c0_i32 = arith.constant 0 : i32
    %c0_i32_0 = arith.constant 0 : i32
    return %arg0, %c0_i32 : i32, i32
  }
  func.func @transform_1(%arg0: i32) -> (i32, i32) {
    %c0_i32 = arith.constant 0 : i32
    %c0_i32_0 = arith.constant 0 : i32
    %c0_i32_1 = arith.constant 0 : i32
    return %c0_i32, %c0_i32_0 : i32, i32
  }
  func.func @transform_2(%arg0: i32) -> (i32, i32) {
    %c0_i32 = arith.constant 0 : i32
    %c0_i32_0 = arith.constant 0 : i32
    %c0_i32_1 = arith.constant 0 : i32
    return %c0_i32, %c0_i32_0 : i32, i32
  }
  func.func @transform_3(%arg0: i32) -> (i32, i32) {
    %c0_i32 = arith.constant 0 : i32
    %c0_i32_0 = arith.constant 0 : i32
    %c0_i32_1 = arith.constant 0 : i32
    return %c0_i32, %c0_i32_0 : i32, i32
  }
  func.func @transform_4(%arg0: i32) -> (i32, i32) {
    %c0_i32 = arith.constant 0 : i32
    %c0_i32_0 = arith.constant 0 : i32
    %c0_i32_1 = arith.constant 0 : i32
    return %c0_i32, %c0_i32_0 : i32, i32
  }
  func.func @transform_5(%arg0: i32) -> (i32, i32) {
    %c0_i32 = arith.constant 0 : i32
    %c0_i32_0 = arith.constant 0 : i32
    %c0_i32_1 = arith.constant 0 : i32
    return %c0_i32, %c0_i32_0 : i32, i32
  }
  func.func @transform_6(%arg0: i32) -> (i32, i32) {
    %c0_i32 = arith.constant 0 : i32
    %c0_i32_0 = arith.constant 0 : i32
    %c0_i32_1 = arith.constant 0 : i32
    return %c0_i32, %c0_i32_0 : i32, i32
  }
  func.func @transform_7(%arg0: i32) -> (i32, i32) {
    %c0_i32 = arith.constant 0 : i32
    %c0_i32_0 = arith.constant 0 : i32
    return %arg0, %c0_i32 : i32, i32
  }
}

</mosaic_0001>

<llo_original>
// kernel: mlp_pallas_apply.1
$region0: #{mlp_pallas_apply.1}
  #allocation0 [shape = 'u32[]', space=smem, size = 0x4, offset = 0x4, fixed_abs, tag = 'smem constant byte address 0x4 - core index']
  #allocation1 [shape = 'u32[72,128]{1,0:T(1,128)}', space=vmem, size = 0x9000, scoped, tag = 'internal scratch']
  %s0 = inlined_call_operand.vmem [shape: f32[16,128], index: 0, kind: input, shape index: {}]
  %s1 = inlined_call_operand.hbm [shape: f32[128,128], index: 1, kind: input, shape index: {}]
  %s2 = inlined_call_operand.hbm [shape: f32[128,128], index: 2, kind: input, shape index: {}]
  %s3 = inlined_call_operand.hbm [shape: f32[128,128], index: 3, kind: input, shape index: {}]
  %s4 = inlined_call_operand.vmem [shape: f32[1,128], index: 4, kind: input, shape index: {}]
  %s5 = inlined_call_operand.vmem [shape: f32[1,128], index: 5, kind: input, shape index: {}]
  %s6 = inlined_call_operand.vmem [shape: f32[1,128], index: 6, kind: input, shape index: {}]
  %s7 = inlined_call_operand.vmem [shape: f32[16,128], index: 7, kind: output, shape index: {}]
  %s8 = sld [smem:[#allocation0]]
  $region50: #{mlp_pallas_apply.1} parent=0
    _
  %s10 = ssub.s32 1, %s8
  %s11 = scalar_select 0, %s10, %s8
  $region1: #{mlp_pallas_apply.1} parent=0
    #allocation2 [shape = 'u8[65536]{0}', space=vmem, size = 0x10000, scoped, tag = 'input window, operand 1, single buffered']
    #allocation3 [shape = 's32[1]{0}', space=sflag, size = 0x4, scoped, tag = 'scoped memory for mlp_pallas_apply.1']
    #allocation4 [shape = 'u8[65536]{0}', space=vmem, size = 0x10000, scoped, tag = 'input window, operand 2, single buffered']
    #allocation5 [shape = 's32[1]{0}', space=sflag, size = 0x4, scoped, tag = 'scoped memory for mlp_pallas_apply.1']
    #allocation6 [shape = 'u8[65536]{0}', space=vmem, size = 0x10000, scoped, tag = 'input window, operand 3, single buffered']
    %12 = vsyncpa [#allocation3], 0
    %13 = vsyncpa [#allocation5], 0
    // Predicated region
    $region2: #{mlp_pallas_apply.1} parent=1 // pred_check
      _
    $region3: #{mlp_pallas_apply.1} parent=1 // pred_check_branch
      %15 = sbr.rel (0) target = $region5
    $region4: #{mlp_pallas_apply.1} parent=1 // pred_region
      _
    $region5: #{mlp_pallas_apply.1} parent=1 // pred_fallthru
      _
    // Predicated region
    $region6: #{mlp_pallas_apply.1} parent=1 // pred_check
      _
    $region7: #{mlp_pallas_apply.1} parent=1 // pred_check_branch
      %17 = sbr.rel (0) target = $region9
    $region8: #{mlp_pallas_apply.1} parent=1 // pred_region
      %19 = vsyncadd [#allocation3], 0
      %s20 = sshll.u32 %s1, 4
      %s21 = int_to_ptr.hbm [resolvable:$true] %s20
      %s22 = sshll.u32 [#allocation2], 4
      %s23 = int_to_ptr.vmem [resolvable:$true] %s22
      %28 = dma.hbm_to_vmem [thread:$0]  %s21, 2048, %s23, [#allocation3], 128, 128, 8
    $region9: #{mlp_pallas_apply.1} parent=1 // pred_fallthru
      _
    // Predicated region
    $region10: #{mlp_pallas_apply.1} parent=1 // pred_check
      _
    $region11: #{mlp_pallas_apply.1} parent=1 // pred_check_branch
      %30 = sbr.rel (0) target = $region13
    $region12: #{mlp_pallas_apply.1} parent=1 // pred_region
      %32 = vsyncadd [#allocation5], 0
      %s33 = sshll.u32 %s2, 4
      %s34 = int_to_ptr.hbm [resolvable:$true] %s33
      %s35 = sshll.u32 [#allocation4], 4
      %s36 = int_to_ptr.vmem [resolvable:$true] %s35
      %41 = dma.hbm_to_vmem [thread:$0]  %s34, 2048, %s36, [#allocation5], 128, 128, 8
    $region13: #{mlp_pallas_apply.1} parent=1 // pred_fallthru
      _
    // Predicated region
    $region14: #{mlp_pallas_apply.1} parent=1 // pred_check
      _
    $region15: #{mlp_pallas_apply.1} parent=1 // pred_check_branch
      %43 = sbr.rel (0) target = $region17
    $region16: #{mlp_pallas_apply.1} parent=1 // pred_region
      %45 = vsyncadd [#allocation5], 0
      %s46 = sshll.u32 %s3, 4
      %s47 = int_to_ptr.hbm [resolvable:$true] %s46
      %s48 = sshll.u32 [#allocation6], 4
      %s49 = int_to_ptr.vmem [resolvable:$true] %s48
      %54 = dma.hbm_to_vmem [thread:$0]  %s47, 2048, %s49, [#allocation5], 128, 128, 8
    $region17: #{mlp_pallas_apply.1} parent=1 // pred_fallthru
      _
    // Predicated region
    $region18: #{mlp_pallas_apply.1} parent=1 // pred_check
      _
    $region19: #{mlp_pallas_apply.1} parent=1 // pred_check_branch
      %56 = sbr.rel (0) target = $region21
    $region20: #{mlp_pallas_apply.1} parent=1 // pred_region
      _
    $region21: #{mlp_pallas_apply.1} parent=1 // pred_fallthru
      _
    // Predicated region
    $region22: #{mlp_pallas_apply.1} parent=1 // pred_check
      _
    $region23: #{mlp_pallas_apply.1} parent=1 // pred_check_branch
      %58 = sbr.rel (0) target = $region25
    $region24: #{mlp_pallas_apply.1} parent=1 // pred_region
      _
    $region25: #{mlp_pallas_apply.1} parent=1 // pred_fallthru
      _
    // Predicated region
    $region26: #{mlp_pallas_apply.1} parent=1 // pred_check
      _
    $region27: #{mlp_pallas_apply.1} parent=1 // pred_check_branch
      %60 = sbr.rel (0) target = $region29
    $region28: #{mlp_pallas_apply.1} parent=1 // pred_region
      _
    $region29: #{mlp_pallas_apply.1} parent=1 // pred_fallthru
      _
    // Predicated region
    $region30: #{mlp_pallas_apply.1} parent=1 // pred_check
      _
    $region31: #{mlp_pallas_apply.1} parent=1 // pred_check_branch
      %62 = sbr.rel (0) target = $region33
    $region32: #{mlp_pallas_apply.1} parent=1 // pred_region
      %64 = dma.done [#allocation3], 2048
    $region33: #{mlp_pallas_apply.1} parent=1 // pred_fallthru
      _
    // Predicated region
    $region34: #{mlp_pallas_apply.1} parent=1 // pred_check
      _
    $region35: #{mlp_pallas_apply.1} parent=1 // pred_check_branch
      %66 = sbr.rel (0) target = $region37
    $region36: #{mlp_pallas_apply.1} parent=1 // pred_region
      %68 = dma.done [#allocation5], 2048
    $region37: #{mlp_pallas_apply.1} parent=1 // pred_fallthru
      _
    // Predicated region
    $region38: #{mlp_pallas_apply.1} parent=1 // pred_check
      _
    $region39: #{mlp_pallas_apply.1} parent=1 // pred_check_branch
      %70 = sbr.rel (0) target = $region41
    $region40: #{mlp_pallas_apply.1} parent=1 // pred_region
      %72 = dma.done [#allocation5], 2048
    $region41: #{mlp_pallas_apply.1} parent=1 // pred_fallthru
      _
    %v73 = vld [vmem:[%s0] sm:$0xff]
    %v74 = vld [vmem:[%s0 + $0x8] sm:$0xff]
    %v75 = vld [vmem:[#allocation2] sm:$0xff]
    %v76 = vld [vmem:[#allocation2 + $0x8] sm:$0xff]
    %v77 = vld [vmem:[#allocation2 + $0x10] sm:$0xff]
    %v78 = vld [vmem:[#allocation2 + $0x18] sm:$0xff]
    %v79 = vld [vmem:[#allocation2 + $0x20] sm:$0xff]
    %v80 = vld [vmem:[#allocation2 + $0x28] sm:$0xff]
    %v81 = vld [vmem:[#allocation2 + $0x30] sm:$0xff]
    %v82 = vld [vmem:[#allocation2 + $0x38] sm:$0xff]
    %v83 = vld [vmem:[#allocation2 + $0x40] sm:$0xff]
    %v84 = vld [vmem:[#allocation2 + $0x48] sm:$0xff]
    %v85 = vld [vmem:[#allocation2 + $0x50] sm:$0xff]
    %v86 = vld [vmem:[#allocation2 + $0x58] sm:$0xff]
    %v87 = vld [vmem:[#allocation2 + $0x60] sm:$0xff]
    %v88 = vld [vmem:[#allocation2 + $0x68] sm:$0xff]
    %v89 = vld [vmem:[#allocation2 + $0x70] sm:$0xff]
    %v90 = vld [vmem:[#allocation2 + $0x78] sm:$0xff]
    %v91 = vld [vmem:[%s4] sm:$0x1]
    %v93 = vperm.slane %v91, 0
    %95 = vmatpush.msra.mxu0 %v90
    %96 = vmatpush.msra.mxu0 %v89
    %97 = vmatpush.msra.mxu0 %v88
    %98 = vmatpush.msra.mxu0 %v87
    %99 = vmatpush.msra.mxu0 %v86
    %100 = vmatpush.msra.mxu0 %v85
    %101 = vmatpush.msra.mxu0 %v84
    %102 = vmatpush.msra.mxu0 %v83
    %103 = vmatpush.msra.mxu0 %v82
    %104 = vmatpush.msra.mxu0 %v81
    %105 = vmatpush.msra.mxu0 %v80
    %106 = vmatpush.msra.mxu0 %v79
    %107 = vmatpush.msra.mxu0 %v78
    %108 = vmatpush.msra.mxu0 %v77
    %109 = vmatpush.msra.mxu0 %v76
    %110 = vmatpush.msra.mxu0 %v75
    %111 = vmatmul.f32.gmra.mxu0 %v73
    %v112 = vpop.f32.mrf.mxu0
    %v113 = vadd.f32 %v93, %v112
    %114 = vmatmul.f32.gmra.mxu0 %v74
    %v115 = vpop.f32.mrf.mxu0
    %v116 = vadd.f32 %v93, %v115
    %117 = vdwg.mxu0
    %v118 = vmax.f32 %v113, 0.0
    %v119 = vmax.f32 %v116, 0.0
    %v120 = vld [vmem:[#allocation4] sm:$0xff]
    %v121 = vld [vmem:[#allocation4 + $0x8] sm:$0xff]
    %v122 = vld [vmem:[#allocation4 + $0x10] sm:$0xff]
    %v123 = vld [vmem:[#allocation4 + $0x18] sm:$0xff]
    %v124 = vld [vmem:[#allocation4 + $0x20] sm:$0xff]
    %v125 = vld [vmem:[#allocation4 + $0x28] sm:$0xff]
    %v126 = vld [vmem:[#allocation4 + $0x30] sm:$0xff]
    %v127 = vld [vmem:[#allocation4 + $0x38] sm:$0xff]
    %v128 = vld [vmem:[#allocation4 + $0x40] sm:$0xff]
    %v129 = vld [vmem:[#allocation4 + $0x48] sm:$0xff]
    %v130 = vld [vmem:[#allocation4 + $0x50] sm:$0xff]
    %v131 = vld [vmem:[#allocation4 + $0x58] sm:$0xff]
    %v132 = vld [vmem:[#allocation4 + $0x60] sm:$0xff]
    %v133 = vld [vmem:[#allocation4 + $0x68] sm:$0xff]
    %v134 = vld [vmem:[#allocation4 + $0x70] sm:$0xff]
    %v135 = vld [vmem:[#allocation4 + $0x78] sm:$0xff]
    %v136 = vld [vmem:[%s5] sm:$0x1]
    %v138 = vperm.slane %v136, 0
    %140 = vmatpush.msra.mxu0 %v135
    %141 = vmatpush.msra.mxu0 %v134
    %142 = vmatpush.msra.mxu0 %v133
    %143 = vmatpush.msra.mxu0 %v132
    %144 = vmatpush.msra.mxu0 %v131
    %145 = vmatpush.msra.mxu0 %v130
    %146 = vmatpush.msra.mxu0 %v129
    %147 = vmatpush.msra.mxu0 %v128
    %148 = vmatpush.msra.mxu0 %v127
    %149 = vmatpush.msra.mxu0 %v126
    %150 = vmatpush.msra.mxu0 %v125
    %151 = vmatpush.msra.mxu0 %v124
    %152 = vmatpush.msra.mxu0 %v123
    %153 = vmatpush.msra.mxu0 %v122
    %154 = vmatpush.msra.mxu0 %v121
    %155 = vmatpush.msra.mxu0 %v120
    %156 = vmatmul.f32.gmra.mxu0 %v118
    %v157 = vpop.f32.mrf.mxu0
    %v158 = vadd.f32 %v138, %v157
    %159 = vmatmul.f32.gmra.mxu0 %v119
    %v160 = vpop.f32.mrf.mxu0
    %v161 = vadd.f32 %v138, %v160
    %162 = vdwg.mxu0
    %v163 = vmax.f32 %v158, 0.0
    %v164 = vmax.f32 %v161, 0.0
    %v165 = vld [vmem:[#allocation6] sm:$0xff]
    %v166 = vld [vmem:[#allocation6 + $0x8] sm:$0xff]
    %v167 = vld [vmem:[#allocation6 + $0x10] sm:$0xff]
    %v168 = vld [vmem:[#allocation6 + $0x18] sm:$0xff]
    %v169 = vld [vmem:[#allocation6 + $0x20] sm:$0xff]
    %v170 = vld [vmem:[#allocation6 + $0x28] sm:$0xff]
    %v171 = vld [vmem:[#allocation6 + $0x30] sm:$0xff]
    %v172 = vld [vmem:[#allocation6 + $0x38] sm:$0xff]
    %v173 = vld [vmem:[#allocation6 + $0x40] sm:$0xff]
    %v174 = vld [vmem:[#allocation6 + $0x48] sm:$0xff]
    %v175 = vld [vmem:[#allocation6 + $0x50] sm:$0xff]
    %v176 = vld [vmem:[#allocation6 + $0x58] sm:$0xff]
    %v177 = vld [vmem:[#allocation6 + $0x60] sm:$0xff]
    %v178 = vld [vmem:[#allocation6 + $0x68] sm:$0xff]
    %v179 = vld [vmem:[#allocation6 + $0x70] sm:$0xff]
    %v180 = vld [vmem:[#allocation6 + $0x78] sm:$0xff]
    %v181 = vld [vmem:[%s6] sm:$0x1]
    %v183 = vperm.slane %v181, 0
    %185 = vmatpush.msra.mxu0 %v180
    %186 = vmatpush.msra.mxu0 %v179
    %187 = vmatpush.msra.mxu0 %v178
    %188 = vmatpush.msra.mxu0 %v177
    %189 = vmatpush.msra.mxu0 %v176
    %190 = vmatpush.msra.mxu0 %v175
    %191 = vmatpush.msra.mxu0 %v174
    %192 = vmatpush.msra.mxu0 %v173
    %193 = vmatpush.msra.mxu0 %v172
    %194 = vmatpush.msra.mxu0 %v171
    %195 = vmatpush.msra.mxu0 %v170
    %196 = vmatpush.msra.mxu0 %v169
    %197 = vmatpush.msra.mxu0 %v168
    %198 = vmatpush.msra.mxu0 %v167
    %199 = vmatpush.msra.mxu0 %v166
    %200 = vmatpush.msra.mxu0 %v165
    %201 = vmatmul.f32.gmra.mxu0 %v163
    %v202 = vpop.f32.mrf.mxu0
    %v203 = vadd.f32 %v183, %v202
    %204 = vmatmul.f32.gmra.mxu0 %v164
    %v205 = vpop.f32.mrf.mxu0
    %v206 = vadd.f32 %v183, %v205
    %207 = vdwg.mxu0
    %208 = vst [vmem:[%s7] sm:$0xff] %v203
    %209 = vst [vmem:[%s7 + $0x8] sm:$0xff] %v206
    // Predicated region
    $region42: #{mlp_pallas_apply.1} parent=1 // pred_check
      _
    $region43: #{mlp_pallas_apply.1} parent=1 // pred_check_branch
      %211 = sbr.rel (0) target = $region45
    $region44: #{mlp_pallas_apply.1} parent=1 // pred_region
      _
    $region45: #{mlp_pallas_apply.1} parent=1 // pred_fallthru
      _
    // Predicated region
    $region46: #{mlp_pallas_apply.1} parent=1 // pred_check
      _
    $region47: #{mlp_pallas_apply.1} parent=1 // pred_check_branch
      %213 = sbr.rel (0) target = $region49
    $region48: #{mlp_pallas_apply.1} parent=1 // pred_region
      _
    $region49: #{mlp_pallas_apply.1} parent=1 // pred_fallthru
      _
    %214 = vsyncpa [#allocation3], 1
    %215 = vsyncpa [#allocation5], 1

</llo_original>
